<compile_context>
chip_gen: v6e
topology: v6e:2x2x1
jax: 0.10.0
libtpu: 0.0.40
codegen_flags: <defaults>
</compile_context>

<pallas_src>
from functools import partial

import jax
import jax.numpy as jnp
from jax.experimental import pallas as pl
from jax.experimental.pallas import tpu as pltpu

EPS = 1e-5


def _fold_bn(gamma, beta, mean, var):
    scale = gamma / jnp.sqrt(var + EPS)
    bias = beta - mean * scale
    return scale, bias


# ------------------- one-time pltpu.roll direction probe ---------------------

_ROLL_JNP_CONVENTION = None


def _roll_follows_jnp_convention():
    """One-time device probe: True if pltpu.roll(x, s) == jnp.roll(x, s)."""
    global _ROLL_JNP_CONVENTION
    if _ROLL_JNP_CONVENTION is None:
        def probe(x_ref, o_ref):
            o_ref[...] = pltpu.roll(x_ref[...], 1, axis=1)

        x = jnp.broadcast_to(jnp.arange(128, dtype=jnp.float32), (8, 128))
        y = pl.pallas_call(
            probe, out_shape=jax.ShapeDtypeStruct((8, 128), jnp.float32))(x)
        _ROLL_JNP_CONVENTION = bool(y[0, 0] == 127.0)
    return _ROLL_JNP_CONVENTION


def _amt(shift, n, jnp_conv):
    """Roll amount so the result satisfies result[i] = x[(i - shift) % n]."""
    s = shift % n
    return s if jnp_conv else (n - s) % n


# ------------------------------ fused kernel --------------------------------

def _fused_inverted_residual_kernel(x_ref, w1_ref, b1_ref, wdw_ref, b2_ref,
                                    wpr_ref, b3_ref, o_ref,
                                    *, H, W, Chid, rows,
                                    sh_lane_m1, sh_lane_p1, sh_row_m1, sh_row_p1):
    # x_ref block: (1, rows, W*Cin) -- `rows = images_per_block * H` lane-flattened rows.
    x_sp = x_ref[0]                                           # (rows, W*Cin)
    L = W * Chid

    # --- stage 1: expand 1x1 conv as block-diagonal matmul, BN folded, ReLU6 ---
    h1 = jnp.dot(x_sp, w1_ref[...], preferred_element_type=jnp.float32)
    h1 = jnp.clip(h1 + b1_ref[...], 0.0, 6.0)                 # (rows, L)

    # --- stage 2: depthwise 3x3 via register-resident shifted taps (no scratch) ---
    lane = jax.lax.broadcasted_iota(jnp.int32, (rows, L), 1)
    rowi = jax.lax.broadcasted_iota(jnp.int32, (rows, L), 0) % H   # row within image

    cols = (
        # w-1 tap column: lanes shifted by +Chid, w==0 masked to zero (pad).
        jnp.where(lane >= Chid, pltpu.roll(h1, sh_lane_m1, axis=1), 0.0),
        # w   tap column
        h1,
        # w+1 tap column: lanes shifted by -Chid, w==W-1 masked to zero (pad).
        jnp.where(lane < L - Chid, pltpu.roll(h1, sh_lane_p1, axis=1), 0.0),
    )

    def tap_sum(kh):                                           # sum over kw for one kh
        s = cols[0] * wdw_ref[pl.ds(3 * kh + 0, 1), :]
        s = s + cols[1] * wdw_ref[pl.ds(3 * kh + 1, 1), :]
        s = s + cols[2] * wdw_ref[pl.ds(3 * kh + 2, 1), :]
        return s

    acc = tap_sum(1)
    acc = acc + jnp.where(rowi >= 1,
                          pltpu.roll(tap_sum(0), sh_row_m1, axis=0), 0.0)   # h-1 row
    acc = acc + jnp.where(rowi < H - 1,
                          pltpu.roll(tap_sum(2), sh_row_p1, axis=0), 0.0)   # h+1 row
    hdw = jnp.clip(acc + b2_ref[...], 0.0, 6.0)                # (rows, L)

    # --- stage 3: project 1x1 + BN fused with DShortCut 1x1 + BN + residual add ---
    cat = jnp.concatenate([hdw, x_sp], axis=1)                 # (rows, W*(Chid+Cin))
    out = jnp.dot(cat, wpr_ref[...], preferred_element_type=jnp.float32)
    o_ref[0] = out + b3_ref[...]                               # (rows, W*Cout), lane-dense


# -------------------------- one-time parameter prep --------------------------

def prepare_inverted_residual_params(params, W):
    """Host-side, call ONCE: fold BN into conv weights and expand into the
    lane-flattened block-diagonal layouts consumed by the kernel."""
    s1, b1 = _fold_bn(*params["bn1"])
    s2, b2 = _fold_bn(*params["bn2"])
    s3, b3 = _fold_bn(*params["bn3"])
    ss, bs = _fold_bn(*params["bn_s"])
    Chid = params["w1"].shape[1]

    eyeW = jnp.eye(W, dtype=jnp.float32)
    return {
        # expand 1x1: BN scale folded into columns; block-diagonal over W.
        "w1": jnp.kron(eyeW, params["w1"] * s1[None, :]),            # (W*Cin, W*Chid)
        "b1": jnp.tile(b1, W)[None, :],                              # (1, W*Chid)
        # depthwise taps with BN scale folded, tiled over W lane groups.
        "wdw": jnp.tile((params["w_dw"] * s2[None, None, :]).reshape(9, Chid), (1, W)),
        "b2": jnp.tile(b2, W)[None, :],                              # (1, W*Chid)
        # project + shortcut stacked into ONE matmul; biases pre-summed.
        "wpr": jnp.concatenate(
            [jnp.kron(eyeW, params["w3"] * s3[None, :]),             # (W*Chid, W*Cout)
             jnp.kron(eyeW, params["ws"] * ss[None, :])], axis=0),   # (W*Cin,  W*Cout)
        "b3": jnp.tile(b3 + bs, W)[None, :],                         # (1, W*Cout)
    }


# --------------------------------- forward -----------------------------------

@partial(jax.jit, static_argnames=("images_per_block", "roll_jnp_conv"))
def _forward_impl(x_nchw, prep, *, images_per_block, roll_jnp_conv):
    N, Cin, H, W = x_nchw.shape
    Chid = prep["wdw"].shape[1] // W
    Cout = prep["b3"].shape[1] // W
    L = W * Chid
    ib = images_per_block
    assert N % ib == 0, (N, ib)
    nb = N // ib
    rows = ib * H

    # NCHW -> lane-flattened (nb, rows, W*Cin); fused into this jit (single dispatch).
    x = jnp.transpose(x_nchw, (0, 2, 3, 1)).astype(jnp.float32)
    x_sp = x.reshape(nb, rows, W * Cin)

    kern = partial(_fused_inverted_residual_kernel,
                   H=H, W=W, Chid=Chid, rows=rows,
                   sh_lane_m1=_amt(Chid, L, roll_jnp_conv),
                   sh_lane_p1=_amt(-Chid, L, roll_jnp_conv),
                   sh_row_m1=_amt(1, rows, roll_jnp_conv),
                   sh_row_p1=_amt(-1, rows, roll_jnp_conv))

    flops = 2 * N * H * ((W * Cin) * (W * Chid)
                         + 9 * W * Chid
                         + (W * (Chid + Cin)) * (W * Cout))
    bytes_accessed = 4 * (x_sp.size + N * H * W * Cout
                          + sum(int(v.size) for v in prep.values()))

    out_sp = pl.pallas_call(
        kern,
        out_shape=jax.ShapeDtypeStruct((nb, rows, W * Cout), jnp.float32),
        grid=(nb,),
        in_specs=[
            pl.BlockSpec((1, rows, W * Cin), lambda n: (n, 0, 0)),
            pl.BlockSpec((W * Cin, L), lambda n: (0, 0)),
            pl.BlockSpec((1, L), lambda n: (0, 0)),
            pl.BlockSpec((9, L), lambda n: (0, 0)),
            pl.BlockSpec((1, L), lambda n: (0, 0)),
            pl.BlockSpec((W * (Chid + Cin), W * Cout), lambda n: (0, 0)),
            pl.BlockSpec((1, W * Cout), lambda n: (0, 0)),
        ],
        out_specs=pl.BlockSpec((1, rows, W * Cout), lambda n: (n, 0, 0)),
        compiler_params=pltpu.CompilerParams(
            dimension_semantics=("parallel",)),
        cost_estimate=pl.CostEstimate(
            flops=flops, transcendentals=0, bytes_accessed=bytes_accessed),
    )(x_sp, prep["w1"], prep["b1"], prep["wdw"], prep["b2"], prep["wpr"], prep["b3"])

    out = out_sp.reshape(N, H, W, Cout)
    return jnp.transpose(out, (0, 3, 1, 2))                    # -> NCHW


def _default_images_per_block(n):
    # Single-TensorCore chips (v5e/v6e): batch everything into one grid step.
    # Dual-TensorCore chips (v4/v5p/v7x): keep 2 parallel grid steps (1 per core).
    try:
        kind = jax.devices()[0].device_kind.lower()
    except Exception:
        kind = ""
    dual_core = any(t in kind for t in ("v4", "v5p", "v7", "7x"))
    if dual_core and n % 2 == 0 and n >= 2:
        return n // 2
    return n


def inverted_residual_forward(x_nchw, prep, stride=1, images_per_block=None):
    """Fused InvertedResidual forward. Input/Output are NCHW like PyTorch.
    `prep` comes from prepare_inverted_residual_params (one-time)."""
    # TODO(synk): stride=2 / expand_ratio==1 / SE configs are not exercised by this
    # module config (residual add requires stride=1); only stride=1 is implemented.
    assert stride == 1, "fused kernel implements the stride=1 residual config"
    if images_per_block is None:
        images_per_block = _default_images_per_block(x_nchw.shape[0])
    return _forward_impl(x_nchw, prep,
                         images_per_block=images_per_block,
                         roll_jnp_conv=_roll_follows_jnp_convention())


# ------------------------- plain-JAX reference ------------------------------

def reference_forward(x_nchw, params, stride):
    def bn(y, g, b, m, v):
        return (y - m) / jnp.sqrt(v + EPS) * g + b

    x = jnp.transpose(x_nchw, (0, 2, 3, 1)).astype(jnp.float32)
    Chid = params["w1"].shape[1]
    y = jnp.einsum("nhwc,cd->nhwd", x, params["w1"])
    y = jnp.clip(bn(y, *params["bn1"]), 0.0, 6.0)
    y = jax.lax.conv_general_dilated(
        y, params["w_dw"].reshape(3, 3, 1, Chid),
        window_strides=(stride, stride), padding=((1, 1), (1, 1)),
        dimension_numbers=("NHWC", "HWIO", "NHWC"),
        feature_group_count=Chid)
    y = jnp.clip(bn(y, *params["bn2"]), 0.0, 6.0)
    y = bn(jnp.einsum("nhwc,cd->nhwd", y, params["w3"]), *params["bn3"])
    sc = bn(jnp.einsum("nhwc,cd->nhwd", x, params["ws"]), *params["bn_s"])
    return jnp.transpose(y + sc, (0, 3, 1, 2))


# --------------------------------- main --------------------------------------

def _make_params(key, cin, chid, cout):
    ks = jax.random.split(key, 20)

    def bn_params(k, c):
        k0, k1, k2, k3 = jax.random.split(k, 4)
        gamma = 0.5 + jax.random.uniform(k0, (c,), jnp.float32)
        beta = 0.1 * jax.random.normal(k1, (c,), jnp.float32)
        mean = 0.1 * jax.random.normal(k2, (c,), jnp.float32)
        var = 0.5 + jax.random.uniform(k3, (c,), jnp.float32)
        return (gamma, beta, mean, var)

    return {
        # conv weights stored pre-transposed: (Cin, Cout) for 1x1, (3,3,C) for dw
        "w1": 0.2 * jax.random.normal(ks[0], (cin, chid), jnp.float32),
        "bn1": bn_params(ks[1], chid),
        "w_dw": 0.2 * jax.random.normal(ks[2], (3, 3, chid), jnp.float32),
        "bn2": bn_params(ks[3], chid),
        "w3": 0.2 * jax.random.normal(ks[4], (chid, cout), jnp.float32),
        "bn3": bn_params(ks[5], cout),
        "ws": 0.2 * jax.random.normal(ks[6], (cin, cout), jnp.float32),
        "bn_s": bn_params(ks[7], cout),
    }


if __name__ == "__main__":
    # InvertedResidual(inp=4, cfg=(16, 16, 8), stride=1, expand_ratio=6, use_res=True)
    inp, cfg, stride = 4, (16, 16, 8), 1
    hidden_dim, oup = cfg[1], cfg[2]
    N, H, W = 2, 16, 16

    key = jax.random.PRNGKey(0)
    kx, kp = jax.random.split(key)
    x = jax.random.normal(kx, (N, inp, H, W), jnp.float32)        # NCHW like PyTorch
    params = _make_params(kp, inp, hidden_dim, oup)

    prep = prepare_inverted_residual_params(params, W=W)          # hoisted one-time prep

    out = jax.block_until_ready(inverted_residual_forward(x, prep, stride))
    ref = jax.block_until_ready(reference_forward(x, params, stride))

    assert out.shape == (N, oup, H, W), out.shape
    assert jnp.allclose(out, ref, atol=1e-3, rtol=1e-3), float(jnp.max(jnp.abs(out - ref)))
    print("KERNEL_OK")
</pallas_src>

<mosaic_0001>
module attributes {stable_mosaic.version = 11 : i64} {
  func.func @probe(%arg0: memref<8x128xf32, #tpu.memory_space<vmem>>, %arg1: memref<8x128xf32, #tpu.memory_space<vmem>>) attributes {dimension_semantics = [], scalar_prefetch = 0 : i64, scratch_operands = 0 : i64, tpu.core_type = #tpu.core_type<tc>} {
    %c0 = arith.constant 0 : index
    %c0_0 = arith.constant 0 : index
    %0 = vector.load %arg0[%c0, %c0_0] : memref<8x128xf32, #tpu.memory_space<vmem>>, vector<8x128xf32>
    %c1_i32 = arith.constant 1 : i32
    %1 = tpu.dynamic_rotate %0 by %c1_i32 dim 1 : vector<8x128xf32>, i32 -> vector<8x128xf32>
    %c0_1 = arith.constant 0 : index
    %c0_2 = arith.constant 0 : index
    %2 = vector.load %arg1[%c0_1, %c0_2] : memref<8x128xf32, #tpu.memory_space<vmem>>, vector<8x128xf32>
    tpu.vector_store %arg1[%c0_1, %c0_2], %1 {strides = array<i32>} : memref<8x128xf32, #tpu.memory_space<vmem>>, vector<8x128xf32>,
    return
  }
}

</mosaic_0001>

<llo_original>
// kernel: tpu_custom_call.1
$region0: #{tpu_custom_call.1}
  #allocation0 [shape = 'u32[]', space=smem, size = 0x4, offset = 0x4, fixed_abs, tag = 'smem constant byte address 0x4 - core index']
  #allocation1 [shape = 'u32[144,128]{1,0:T(1,128)}', space=vmem, size = 0x12000, scoped, tag = 'internal scratch']
  %s0 = inlined_call_operand.hbm [shape: f32[8,128], index: 0, kind: input, shape index: {}]
  %s1 = inlined_call_operand.hbm [shape: f32[8,128], index: 1, kind: output, shape index: {}]
  %s2 = sld [smem:[#allocation0]]
  $region18: #{tpu_custom_call.1} parent=0
    _
  %s4 = ssub.s32 1, %s2
  %s5 = scalar_select 0, %s4, %s2
  $region1: #{tpu_custom_call.1} parent=0
    #allocation2 [shape = 'u8[4096]{0}', space=vmem, size = 0x1000, scoped, tag = 'input window, operand 0, single buffered']
    #allocation3 [shape = 's32[1]{0}', space=sflag, size = 0x4, scoped, tag = 'scoped memory for tpu_custom_call.1']
    #allocation4 [shape = 's32[1]{0}', space=sflag, size = 0x4, scoped, tag = 'scoped memory for tpu_custom_call.1']
    #allocation5 [shape = 'u8[4096]{0}', space=vmem, size = 0x1000, scoped, tag = 'output window, operand 0, single buffered']
    %6 = vsyncpa [#allocation3], 0
    %7 = vsyncpa [#allocation4], 0
    // Predicated region
    $region2: #{tpu_custom_call.1} parent=1 // pred_check
      _
    $region3: #{tpu_custom_call.1} parent=1 // pred_check_branch
      %9 = sbr.rel (0) target = $region5
    $region4: #{tpu_custom_call.1} parent=1 // pred_region
      %s11 = ssub.s32 128, 128
      %12 = vsyncadd [#allocation3], %s11
      %s14 = sshll.u32 [#allocation2], 4
      %s15 = int_to_ptr.vmem [resolvable:$true] %s14
      %17 = dma.hbm_to_vmem [thread:$0]  %s0, 128, %s15, [#allocation3]
    $region5: #{tpu_custom_call.1} parent=1 // pred_fallthru
      _
    // Predicated region
    $region6: #{tpu_custom_call.1} parent=1 // pred_check
      _
    $region7: #{tpu_custom_call.1} parent=1 // pred_check_branch
      %19 = sbr.rel (0) target = $region9
    $region8: #{tpu_custom_call.1} parent=1 // pred_region
      %20 = dma.done [#allocation3], 128
    $region9: #{tpu_custom_call.1} parent=1 // pred_fallthru
      _
    %v21 = vld [vmem:[#allocation2] sm:$0xff]
    %22 = vrot.lane.b32.xlu0 %v21, 1
    %v23 = vpop.permute.xlu0 %22
    %24 = vst [vmem:[#allocation5] sm:$0xff] %v23
    // Predicated region
    $region10: #{tpu_custom_call.1} parent=1 // pred_check
      _
    $region11: #{tpu_custom_call.1} parent=1 // pred_check_branch
      %26 = sbr.rel (0) target = $region13
    $region12: #{tpu_custom_call.1} parent=1 // pred_region
      %s28 = ssub.s32 128, 128
      %29 = vsyncadd [#allocation4], %s28
      %s31 = sshll.u32 [#allocation5], 4
      %s32 = int_to_ptr.vmem [resolvable:$true] %s31
      %34 = dma.vmem_to_hbm [thread:$0]  %s32, 128, %s1, [#allocation4]
    $region13: #{tpu_custom_call.1} parent=1 // pred_fallthru
      _
    // Predicated region
    $region14: #{tpu_custom_call.1} parent=1 // pred_check
      _
    $region15: #{tpu_custom_call.1} parent=1 // pred_check_branch
      %36 = sbr.rel (0) target = $region17
    $region16: #{tpu_custom_call.1} parent=1 // pred_region
      %37 = dma.done [#allocation4], 128
    $region17: #{tpu_custom_call.1} parent=1 // pred_fallthru
      _
    %38 = vsyncpa [#allocation3], 1
    %39 = vsyncpa [#allocation4], 1

</llo_original>
